<compile_context>
chip_gen: v7x
topology: tpu7x:2x2x1
jax: 0.10.0
libtpu: 0.0.40
codegen_flags: <defaults>
</compile_context>

<pallas_src>
import random
import numpy as np
import jax
import jax.numpy as jnp
from jax import lax
from jax.experimental import pallas as pl
from jax.experimental.pallas import tpu as pltpu


def _round_up(x, m):
    return -(-x // m) * m


def _vmem_limit(buf_bytes):
    # double-buffered tiles + headroom, floored so Mosaic internal scratch fits
    return int(min(max(2 * buf_bytes + (4 << 20), 16 << 20), 100 << 20))


# ------------------------- kernel 1: similarity matmul -------------------------

def _simmat_kernel(a_ref, p_ref, o_ref):
    # sim = anc @ pos.T : contract the last (feature) dim of BOTH operands, so no
    # host-side transpose / extra [D, b] array is ever materialized.
    o_ref[...] = lax.dot_general(
        a_ref[...], p_ref[...],
        dimension_numbers=(((1,), (1,)), ((), ())),
        preferred_element_type=jnp.float32)


def _similarity_matrix(anc_f, pos_f, *, tm, tn):
    b, d = anc_f.shape
    bm = _round_up(b, tm)
    bn = _round_up(b, tn)
    # f32 operands to match torch.mm accuracy (the matmul is tiny vs the AP pass).
    a = jnp.pad(anc_f.astype(jnp.float32), ((0, bm - b), (0, 0)))
    p = jnp.pad(pos_f.astype(jnp.float32), ((0, bn - b), (0, 0)))

    vmem_limit = _vmem_limit(tm * d * 4 + tn * d * 4 + tm * tn * 4)

    return pl.pallas_call(
        _simmat_kernel,
        out_shape=jax.ShapeDtypeStruct((bm, bn), jnp.float32),
        grid_spec=pltpu.PrefetchScalarGridSpec(
            num_scalar_prefetch=0,
            grid=(bm // tm, bn // tn),
            in_specs=[
                pl.BlockSpec((tm, d), lambda i, j: (i, 0)),   # anc row tile
                pl.BlockSpec((tn, d), lambda i, j: (j, 0)),   # pos row tile
            ],
            out_specs=pl.BlockSpec((tm, tn), lambda i, j: (i, j)),
        ),
        compiler_params=pltpu.CompilerParams(
            dimension_semantics=("parallel", "parallel"),
            vmem_limit_bytes=vmem_limit),
    )(a, p)


# ------------------------- kernel 2: R2D2 APLoss.compute_AP -------------------------

def _pad_nbs_cumsum(nq, min_val, max_val, n_pad):
    """Cumulative per-bin nbs contribution of the zero-padded lanes (compile time).

    Mirrors the in-kernel f32 math on the padded value x = 0.0 so it can be
    subtracted exactly, removing the need for a per-bin lane mask multiply.
    """
    if n_pad == 0:
        return [0.0] * nq
    a32 = np.float32((nq - 1) / (max_val - min_val))
    t_pad = float((np.float32(0.0) - np.float32(min_val)) * a32)
    q = np.zeros(nq, np.float64)
    for k in range(nq):
        if k == 0:
            q[k] = min(max(t_pad - (nq - 2), 0.0), 1.0)
        elif k == nq - 1:
            q[k] = min(max(1.0 - t_pad, 0.0), 1.0)
        else:
            q[k] = max(1.0 - abs(t_pad - (nq - 1 - k)), 0.0)
    return [float(v) for v in np.cumsum(n_pad * q)]


def _make_ap_kernel(nq, min_val, max_val, n_pad):
    a = float(nq - 1) / float(max_val - min_val)
    mn = float(min_val)
    cum_pad = _pad_nbs_cumsum(nq, min_val, max_val, n_pad)

    def ap_kernel(x_ref, ap_ref):
        x = x_ref[...]                       # [TB, Mp] f32 similarities, col 0 = positive
        # R2D2's fixed Conv1d(1, 2*nq, 1) quantizer is exactly, on t = a*(x - min):
        #   q_0      = clamp(t - (nq-2), 0, 1)        (saturates for x >= max)
        #   q_k      = relu(1 - |t - (nq-1-k)|)       (interior bins)
        #   q_{nq-1} = clamp(1 - t, 0, 1)             (saturates for x <= min)
        t = (x - mn) * a
        tp = t[:, 0:1]                       # positive-column coordinate [TB, 1]

        zero = jnp.zeros_like(tp)
        cum_nbs, cum_rec, ap_num, rec_tot = zero, zero, zero, zero
        for k in range(nq):                  # single fused (unrolled) pass over the bins
            if k == 0:
                qk = jnp.minimum(jnp.maximum(t - (nq - 2), 0.0), 1.0)
                rk = jnp.minimum(jnp.maximum(tp - (nq - 2), 0.0), 1.0)
            elif k == nq - 1:
                qk = jnp.minimum(jnp.maximum(1.0 - t, 0.0), 1.0)
                rk = jnp.minimum(jnp.maximum(1.0 - tp, 0.0), 1.0)
            else:
                c = float(nq - 1 - k)
                qk = jnp.maximum(1.0 - jnp.abs(t - c), 0.0)
                rk = jnp.maximum(1.0 - jnp.abs(tp - c), 0.0)
            # nbs over the real samples: lane-reduce (XLU) then subtract the
            # compile-time contribution of the zero-padded lanes.
            cum_nbs = cum_nbs + jnp.sum(qk, axis=1, keepdims=True)
            cum_rec = cum_rec + rk           # labels == e_0 -> rec_k = q_k(positive)
            denom = jnp.maximum(cum_nbs - cum_pad[k], 0.0) + 1e-16
            ap_num = ap_num + rk * (cum_rec / denom)     # prec_k * rec_k
            rec_tot = rec_tot + rk
        # ap = sum_k prec_k * rec_k / rec_tot   (rec_tot is k-independent -> factored out)
        ap_ref[...] = ap_num / rec_tot

    return ap_kernel


def _compute_ap(sim_final, nq, min_val, max_val, *, tb):
    b, m = sim_final.shape
    bp = _round_up(b, tb)
    mp = _round_up(m, 128)                   # lane-dense sample axis
    x = jnp.pad(sim_final.astype(jnp.float32), ((0, bp - b), (0, mp - m)))

    vmem_limit = _vmem_limit(tb * mp * 4 + tb * 4)

    ap = pl.pallas_call(
        _make_ap_kernel(nq, float(min_val), float(max_val), mp - m),
        out_shape=jax.ShapeDtypeStruct((bp, 1), jnp.float32),
        grid_spec=pltpu.PrefetchScalarGridSpec(
            num_scalar_prefetch=0,
            grid=(bp // tb,),
            in_specs=[pl.BlockSpec((tb, mp), lambda i: (i, 0))],
            out_specs=pl.BlockSpec((tb, 1), lambda i: (i, 0)),
        ),
        compiler_params=pltpu.CompilerParams(
            dimension_semantics=("parallel",),
            vmem_limit_bytes=vmem_limit),
    )(x)
    return ap[:b, 0]


# ------------------------------------ wrapper ------------------------------------

def ap_criterion_rnd_negs(anc_feat, pos_feat, kpts_crop_ids,
                          knn=20, nq=20, min_val=0.0, max_val=1.0, seed=0):
    """Mirrors APCriterionRndNegs.forward (euc=False)."""
    rng = random.Random(seed)   # deterministic stand-in for python `random.shuffle`

    # --- host-side (static) crop filtering, exactly as the reference python loop ---
    keep, negs_per_crop = [], []
    n = 0
    for kpc in kpts_crop_ids:
        kpc = int(kpc)
        if kpc > 1:
            keep.append((n, kpc))
            negs_per_crop.append(kpc - 1)
        n += kpc
    assert keep, "need at least one crop with more than one keypoint"

    anc_f = jnp.concatenate([anc_feat[s:s + c, :] for s, c in keep], axis=0)
    pos_f = jnp.concatenate([pos_feat[s:s + c, :] for s, c in keep], axis=0)
    b, _d = anc_f.shape

    # --- Pallas kernel 1: tiled similarity matmul ---
    tm = min(256, _round_up(b, 8))
    tn = min(512, _round_up(b, 128))
    sim_mtx = _similarity_matrix(anc_f, pos_f, tm=tm, tn=tn)     # [bm_pad, bn_pad]

    # --- glue: seeded random negative-column selection on the off-diagonal view,
    #     replicated as STATIC numpy index math and composed into ONE gather ---
    width = b - 1
    sel_cols = []
    c = 0
    for kneg in negs_per_crop:
        excl = list(range(0, c)) + list(range(c + kneg, width))
        idxs = list(range(len(excl)))
        rng.shuffle(idxs)
        sel_cols.extend(excl[i] for i in idxs[:knn])
        c += kneg + 1

    rows = np.arange(b, dtype=np.int64)[:, None]                 # diagonal column per row
    sel = np.asarray(sel_cols, np.int64)[None, :]                # off-diagonal column ids
    neg_cols = sel + (sel >= rows)                               # map to full-matrix columns
    final_cols = np.concatenate([rows, neg_cols], axis=1).astype(np.int32)   # [b, 1+M]

    sim_final = jnp.take_along_axis(sim_mtx[:b, :], jnp.asarray(final_cols), axis=1)

    # --- Pallas kernel 2: R2D2 APLoss.compute_AP (row-tiled, lane-padded) ---
    tb = min(512, _round_up(b, 8))
    ap = _compute_ap(sim_final, nq, min_val, max_val, tb=tb)

    return (1.0 - ap).mean(), ap.mean()


# -------------------------------------- demo --------------------------------------

if __name__ == "__main__":
    key = jax.random.PRNGKey(0)
    D = 32
    kpts_crop_ids = [3, 1, 4, 2]      # N = 10 keypoints; crops with >1 kpt -> b = 9
    N = sum(kpts_crop_ids)

    k1, k2 = jax.random.split(key)
    anc = jax.random.normal(k1, (N, D), jnp.float32)
    pos = jax.random.normal(k2, (N, D), jnp.float32)
    # L2-normalize so similarities live roughly in the quantizer's [0, 1] range.
    anc = anc / jnp.linalg.norm(anc, axis=1, keepdims=True)
    pos = pos / jnp.linalg.norm(pos, axis=1, keepdims=True)

    loss, ap_mean = ap_criterion_rnd_negs(anc, pos, kpts_crop_ids,
                                          knn=20, nq=20, min_val=0.0, max_val=1.0)
    jax.block_until_ready((loss, ap_mean))
    print("KERNEL_OK")
</pallas_src>

<mosaic_0001>
module attributes {stable_mosaic.version = 11 : i64} {
  func.func @_simmat_kernel(%arg0: i32, %arg1: i32, %arg2: memref<16x32xf32, #tpu.memory_space<vmem>>, %arg3: memref<128x32xf32, #tpu.memory_space<vmem>>, %arg4: memref<16x128xf32, #tpu.memory_space<vmem>>) attributes {dimension_semantics = [#tpu.dimension_semantics<parallel>, #tpu.dimension_semantics<parallel>], iteration_bounds = array<i64: 1, 1>, scalar_prefetch = 0 : i64, scratch_operands = 0 : i64, tpu.core_type = #tpu.core_type<tc>, window_params = [{transform_indices = @transform_0, window_bounds = array<i64: 16, 32>}, {transform_indices = @transform_1, window_bounds = array<i64: 128, 32>}, {transform_indices = @transform_2, window_bounds = array<i64: 16, 128>}]} {
    %c0 = arith.constant 0 : index
    %c0_0 = arith.constant 0 : index
    %0 = vector.load %arg2[%c0, %c0_0] : memref<16x32xf32, #tpu.memory_space<vmem>>, vector<16x32xf32>
    %c0_1 = arith.constant 0 : index
    %c0_2 = arith.constant 0 : index
    %1 = vector.load %arg3[%c0_1, %c0_2] : memref<128x32xf32, #tpu.memory_space<vmem>>, vector<128x32xf32>
    %cst = arith.constant dense<0.000000e+00> : vector<16x128xf32>
    %2 = tpu.matmul %0, %1, %cst {dimension_numbers = #tpu.dot_dimension_numbers<[1], [1], [0], [0], [0, 0, 1, 0], [], []>} : vector<16x32xf32>, vector<128x32xf32>, vector<16x128xf32> -> vector<16x128xf32>
    %c0_3 = arith.constant 0 : index
    %c0_4 = arith.constant 0 : index
    %3 = vector.load %arg4[%c0_3, %c0_4] : memref<16x128xf32, #tpu.memory_space<vmem>>, vector<16x128xf32>
    tpu.vector_store %arg4[%c0_3, %c0_4], %2 {strides = array<i32>} : memref<16x128xf32, #tpu.memory_space<vmem>>, vector<16x128xf32>,
    return
  }
  func.func @transform_0(%arg0: i32, %arg1: i32) -> (i32, i32) {
    %c0_i32 = arith.constant 0 : i32
    %c0_i32_0 = arith.constant 0 : i32
    return %arg0, %c0_i32 : i32, i32
  }
  func.func @transform_1(%arg0: i32, %arg1: i32) -> (i32, i32) {
    %c0_i32 = arith.constant 0 : i32
    %c0_i32_0 = arith.constant 0 : i32
    return %arg1, %c0_i32 : i32, i32
  }
  func.func @transform_2(%arg0: i32, %arg1: i32) -> (i32, i32) {
    %c0_i32 = arith.constant 0 : i32
    return %arg0, %arg1 : i32, i32
  }
}

</mosaic_0001>

<llo_original>
// kernel: tpu_custom_call.1
$region0: #{tpu_custom_call.1}
  #allocation0 [shape = 'u32[]', space=smem, size = 0x4, offset = 0x4, fixed_abs, tag = 'smem constant byte address 0x4 - core index']
  #allocation1 [shape = 'u32[144,128]{1,0:T(1,128)}', space=vmem, size = 0x12000, scoped, tag = 'internal scratch']
  %s0 = inlined_call_operand.vmem [shape: f32[16,32], index: 0, kind: input, shape index: {}]
  %s1 = inlined_call_operand.vmem [shape: f32[128,32], index: 1, kind: input, shape index: {}]
  %s2 = inlined_call_operand.hbm [shape: f32[16,128], index: 2, kind: output, shape index: {}]
  %s3 = sld [smem:[#allocation0]]
  $region18: #{tpu_custom_call.1} parent=0
    _
  %s5 = ssub.s32 1, %s3
  %s6 = scalar_select 0, %s5, %s3
  $region1: #{tpu_custom_call.1} parent=0
    #allocation2 [shape = 'u8[8192]{0}', space=vmem, size = 0x2000, scoped, tag = 'output window, operand 0, single buffered']
    #allocation3 [shape = 's32[1]{0}', space=sflag, size = 0x4, scoped, tag = 'scoped memory for tpu_custom_call.1']
    %7 = vsyncpa [#allocation3], 0
    // Predicated region
    $region2: #{tpu_custom_call.1} parent=1 // pred_check
      _
    $region3: #{tpu_custom_call.1} parent=1 // pred_check_branch
      %9 = sbr.rel (0) target = $region5
    $region4: #{tpu_custom_call.1} parent=1 // pred_region
      _
    $region5: #{tpu_custom_call.1} parent=1 // pred_fallthru
      _
    // Predicated region
    $region6: #{tpu_custom_call.1} parent=1 // pred_check
      _
    $region7: #{tpu_custom_call.1} parent=1 // pred_check_branch
      %11 = sbr.rel (0) target = $region9
    $region8: #{tpu_custom_call.1} parent=1 // pred_region
      _
    $region9: #{tpu_custom_call.1} parent=1 // pred_fallthru
      _
    %v12 = vld [vmem:[%s0] sm:$0xff]
    %v13 = vld [vmem:[%s0 + $0x8] sm:$0xff]
    %v14 = vld [vmem:[%s1] sm:$0xff]
    %v15 = vld [vmem:[%s1 + $0x8] sm:$0xff]
    %v16 = vld [vmem:[%s1 + $0x10] sm:$0xff]
    %v17 = vld [vmem:[%s1 + $0x18] sm:$0xff]
    %v18 = vld [vmem:[%s1 + $0x20] sm:$0xff]
    %v19 = vld [vmem:[%s1 + $0x28] sm:$0xff]
    %v20 = vld [vmem:[%s1 + $0x30] sm:$0xff]
    %v21 = vld [vmem:[%s1 + $0x38] sm:$0xff]
    %v22 = vld [vmem:[%s1 + $0x40] sm:$0xff]
    %v23 = vld [vmem:[%s1 + $0x48] sm:$0xff]
    %v24 = vld [vmem:[%s1 + $0x50] sm:$0xff]
    %v25 = vld [vmem:[%s1 + $0x58] sm:$0xff]
    %v26 = vld [vmem:[%s1 + $0x60] sm:$0xff]
    %v27 = vld [vmem:[%s1 + $0x68] sm:$0xff]
    %v28 = vld [vmem:[%s1 + $0x70] sm:$0xff]
    %v29 = vld [vmem:[%s1 + $0x78] sm:$0xff]
    %vm30 = vcmask 261120
    %v32 = vsel %vm30, %v12, 0
    %v35 = vsel %vm30, %v13, 0
    %v38 = vsel %vm30, %v14, 0
    %v41 = vsel %vm30, %v15, 0
    %v44 = vsel %vm30, %v16, 0
    %v47 = vsel %vm30, %v17, 0
    %v50 = vsel %vm30, %v18, 0
    %v53 = vsel %vm30, %v19, 0
    %v56 = vsel %vm30, %v20, 0
    %v59 = vsel %vm30, %v21, 0
    %v62 = vsel %vm30, %v22, 0
    %v65 = vsel %vm30, %v23, 0
    %v68 = vsel %vm30, %v24, 0
    %v71 = vsel %vm30, %v25, 0
    %v74 = vsel %vm30, %v26, 0
    %v77 = vsel %vm30, %v27, 0
    %v80 = vsel %vm30, %v28, 0
    %v83 = vsel %vm30, %v29, 0
    %85 = vmatprep.subr.mxu0 0.0
    %86 = vmatpush1.xpose.msra.mxu0 %v38
    %87 = vmatprep.subr.mxu0 0.0
    %88 = vmatpush1.xpose.msra.mxu0 %v41
    %89 = vmatprep.subr.mxu0 0.0
    %90 = vmatpush1.xpose.msra.mxu0 %v44
    %91 = vmatprep.subr.mxu0 0.0
    %92 = vmatpush1.xpose.msra.mxu0 %v47
    %93 = vmatprep.subr.mxu0 0.0
    %94 = vmatpush1.xpose.msra.mxu0 %v50
    %95 = vmatprep.subr.mxu0 0.0
    %96 = vmatpush1.xpose.msra.mxu0 %v53
    %97 = vmatprep.subr.mxu0 0.0
    %98 = vmatpush1.xpose.msra.mxu0 %v56
    %99 = vmatprep.subr.mxu0 0.0
    %100 = vmatpush1.xpose.msra.mxu0 %v59
    %101 = vmatprep.subr.mxu0 0.0
    %102 = vmatpush1.xpose.msra.mxu0 %v62
    %103 = vmatprep.subr.mxu0 0.0
    %104 = vmatpush1.xpose.msra.mxu0 %v65
    %105 = vmatprep.subr.mxu0 0.0
    %106 = vmatpush1.xpose.msra.mxu0 %v68
    %107 = vmatprep.subr.mxu0 0.0
    %108 = vmatpush1.xpose.msra.mxu0 %v71
    %109 = vmatprep.subr.mxu0 0.0
    %110 = vmatpush1.xpose.msra.mxu0 %v74
    %111 = vmatprep.subr.mxu0 0.0
    %112 = vmatpush1.xpose.msra.mxu0 %v77
    %113 = vmatprep.subr.mxu0 0.0
    %114 = vmatpush1.xpose.msra.mxu0 %v80
    %115 = vmatprep.subr.mxu0 0.0
    %116 = vmatpush1.xpose.msra.mxu0 %v83
    %117 = vmatprep.subr.mxu0 0.0
    %118 = vmatpush1.xpose.msra.mxu0 0.0
    %119 = vmatprep.subr.mxu0 0.0
    %120 = vmatpush1.xpose.msra.mxu0 0.0
    %121 = vmatprep.subr.mxu0 0.0
    %122 = vmatpush1.xpose.msra.mxu0 0.0
    %123 = vmatprep.subr.mxu0 0.0
    %124 = vmatpush1.xpose.msra.mxu0 0.0
    %125 = vmatprep.subr.mxu0 0.0
    %126 = vmatpush1.xpose.msra.mxu0 0.0
    %127 = vmatprep.subr.mxu0 0.0
    %128 = vmatpush1.xpose.msra.mxu0 0.0
    %129 = vmatprep.subr.mxu0 0.0
    %130 = vmatpush1.xpose.msra.mxu0 0.0
    %131 = vmatprep.subr.mxu0 0.0
    %132 = vmatpush1.xpose.msra.mxu0 0.0
    %133 = vmatprep.subr.mxu0 0.0
    %134 = vmatpush1.xpose.msra.mxu0 0.0
    %135 = vmatprep.subr.mxu0 0.0
    %136 = vmatpush1.xpose.msra.mxu0 0.0
    %137 = vmatprep.subr.mxu0 0.0
    %138 = vmatpush1.xpose.msra.mxu0 0.0
    %139 = vmatprep.subr.mxu0 0.0
    %140 = vmatpush1.xpose.msra.mxu0 0.0
    %141 = vmatprep.subr.mxu0 0.0
    %142 = vmatpush1.xpose.msra.mxu0 0.0
    %143 = vmatprep.subr.mxu0 0.0
    %144 = vmatpush1.xpose.msra.mxu0 0.0
    %145 = vmatprep.subr.mxu0 0.0
    %146 = vmatpush1.xpose.msra.mxu0 0.0
    %147 = vmatprep.subr.mxu0 0.0
    %148 = vmatpush1.xpose.msra.mxu0 0.0
    %149 = vmatprep.mubr.f32.mxu0 0.0
    %150 = vmatmul.mubr.f32.gmra.mrb[0].mxu0 %v32
    %v151 = vpop.f32.mrb[0].mxu0
    %v152 = vadd.f32 0.0, %v151
    %v153 = vpop.f32.mrb[0].mxu0
    %154 = vmatprep.mubr.f32.mxu0 0.0
    %155 = vmatmul.mubr.f32.gmra.mrb[0].mxu0 %v35
    %v156 = vpop.f32.mrb[0].mxu0
    %v157 = vadd.f32 0.0, %v156
    %v158 = vpop.f32.mrb[0].mxu0
    %159 = vdwg.mxu0
    %160 = vst [vmem:[#allocation2] sm:$0xff] %v152
    %161 = vst [vmem:[#allocation2 + $0x8] sm:$0xff] %v157
    // Predicated region
    $region10: #{tpu_custom_call.1} parent=1 // pred_check
      _
    $region11: #{tpu_custom_call.1} parent=1 // pred_check_branch
      %163 = sbr.rel (0) target = $region13
    $region12: #{tpu_custom_call.1} parent=1 // pred_region
      %s165 = ssub.s32 256, 256
      %166 = vsyncadd [#allocation3], %s165
      %s167 = sshll.u32 [#allocation2], 4
      %s168 = int_to_ptr.vmem [resolvable:$true] %s167
      %173 = dma.vmem_to_hbm [thread:$0]  %s168, 256, %s2, [#allocation3], 128, 128, 8
    $region13: #{tpu_custom_call.1} parent=1 // pred_fallthru
      _
    // Predicated region
    $region14: #{tpu_custom_call.1} parent=1 // pred_check
      _
    $region15: #{tpu_custom_call.1} parent=1 // pred_check_branch
      %175 = sbr.rel (0) target = $region17
    $region16: #{tpu_custom_call.1} parent=1 // pred_region
      %176 = dma.done [#allocation3], 256
    $region17: #{tpu_custom_call.1} parent=1 // pred_fallthru
      _
    %177 = vsyncpa [#allocation3], 1

</llo_original>
